<compile_context>
chip_gen: v7x
topology: tpu7x:2x2x1
jax: 0.10.0
libtpu: 0.0.40
codegen_flags: <defaults>
</compile_context>

<pallas_src>
import functools

import jax
import jax.numpy as jnp
from jax import lax
from jax.experimental import pallas as pl
from jax.experimental.pallas import tpu as pltpu


NEG_INF = -1e30  # finite "masked" value: avoids inf-inf NaNs in online softmax


def _supports_bf16_eup():
    """bf16 transcendentals are fast/safe on v6e (Trillium) and v7x, not v5e."""
    try:
        kind = jax.devices()[0].device_kind.lower()
    except Exception:
        return False
    return ("v6" in kind) or ("v7" in kind) or ("trillium" in kind)


def _choose_block(length, target, min_block=128):
    b = min(target, length)
    while length % b != 0 and b > min_block:
        b //= 2
    if length % b != 0:
        b = length  # full-extent block is always legal
    return b


# ----------------------------- Pallas kernels ------------------------------

def _project_kernel(x_ref, w_ref, o_ref, *, scale):
    """Row-tiled projection: o = (x @ W) * scale, bf16 output, f32 MXU acc."""
    xb = x_ref[...].astype(jnp.bfloat16)
    y = jnp.dot(xb, w_ref[...], preferred_element_type=jnp.float32)
    if scale != 1.0:
        y = y * scale
    o_ref[...] = y.astype(o_ref.dtype)


def _flash_attn_kernel(qp_ref, kp_ref, vp_ref, o_ref, m_sc, l_sc, acc_sc,
                       *, block_q, block_kv, causal, bf16_exp):
    """Grid = (q blocks, kv blocks).  Online softmax over kv blocks.

    Qp is pre-scaled bf16 (projection + 1/sqrt(d_k) done in stage 1).
    Each kv block: s = Qp @ Kp^T (MXU), causal mask via global iota offsets,
    f32 online-softmax update, acc += softmax(s) @ Vp (MXU).
    Causally-dead kv blocks are skipped via pl.when (their DMA is elided by the
    clamped index_map in the wrapper).
    On last j: o = acc * reciprocal(l)  (approx reciprocal on the EUP).
    """
    i = pl.program_id(0)
    j = pl.program_id(1)

    @pl.when(j == 0)
    def _init():
        m_sc[...] = jnp.full(m_sc.shape, NEG_INF, jnp.float32)
        l_sc[...] = jnp.zeros_like(l_sc)
        acc_sc[...] = jnp.zeros_like(acc_sc)

    def _block():
        # (bq, d) x (bkv, d) -> (bq, bkv), contracting last dims (no transpose).
        s = lax.dot_general(qp_ref[...], kp_ref[...],
                            (((1,), (1,)), ((), ())),
                            preferred_element_type=jnp.float32)
        if causal:
            row = i * block_q + lax.broadcasted_iota(jnp.int32, s.shape, 0)
            col = j * block_kv + lax.broadcasted_iota(jnp.int32, s.shape, 1)
            s = jnp.where(col > row, NEG_INF, s)
        m_prev = m_sc[...]
        m_new = jnp.maximum(m_prev, jnp.max(s, axis=1, keepdims=True))
        alpha = jnp.exp(m_prev - m_new)
        if bf16_exp:
            # bf16 EUP exp (v6e/v7x); p feeds the PV matmul directly as bf16.
            p_mm = jnp.exp((s - m_new).astype(jnp.bfloat16))
            p_sum = jnp.sum(p_mm.astype(jnp.float32), axis=1, keepdims=True)
        else:
            p_f32 = jnp.exp(s - m_new)
            p_sum = jnp.sum(p_f32, axis=1, keepdims=True)
            p_mm = p_f32.astype(jnp.bfloat16)
        # TODO(synk): m_sc/l_sc are (block_q, 1) -> narrow masked stores; widening
        # to a broadcast (block_q, 128) tile is a small further win on v5e.
        l_sc[...] = alpha * l_sc[...] + p_sum
        acc_sc[...] = alpha * acc_sc[...] + jnp.dot(
            p_mm, vp_ref[...], preferred_element_type=jnp.float32)
        m_sc[...] = m_new

    if causal:
        # Skip kv blocks entirely above the diagonal for this q block.
        @pl.when(j * block_kv <= i * block_q + (block_q - 1))
        def _():
            _block()
    else:
        _block()

    @pl.when(j == pl.num_programs(1) - 1)
    def _finalize():
        o_ref[...] = (acc_sc[...] *
                      pl.reciprocal(l_sc[...], approx=True)).astype(o_ref.dtype)


# ------------------------------ wrappers ------------------------------------

def _project(x, w_bf16, *, scale=1.0, block_rows=512):
    """Row-tiled projection pallas_call (bf16 output)."""
    R, dim = x.shape
    dout = w_bf16.shape[1]
    br = _choose_block(R, block_rows)
    # v7x megacore: prefer >= 2 row blocks so both TensorCores get work.
    if R // br < 2 and br >= 256 and br % 2 == 0 and R % (br // 2) == 0:
        br //= 2
    return pl.pallas_call(
        functools.partial(_project_kernel, scale=scale),
        out_shape=jax.ShapeDtypeStruct((R, dout), jnp.bfloat16),
        grid_spec=pltpu.PrefetchScalarGridSpec(
            num_scalar_prefetch=0,
            grid=(R // br,),
            in_specs=[
                pl.BlockSpec((br, dim), lambda i: (i, 0)),
                pl.BlockSpec((dim, dout), lambda i: (0, 0)),
            ],
            out_specs=pl.BlockSpec((br, dout), lambda i: (i, 0))),
        compiler_params=pltpu.CompilerParams(
            dimension_semantics=("parallel",)),
    )(x, w_bf16)


def attention_layer(q, k, v, W_q, W_k, W_v, *, d_k, mask,
                    block_q=256, block_kv=512, bf16_exp=None):
    """Pallas implementation of AttentionLayer.forward (dropout never applied)."""
    n, dim = q.shape
    N, _ = k.shape
    dk_out = W_q.shape[1]
    dv = W_v.shape[1]
    assert dk_out == W_k.shape[1], "module requires d_k == d_v for Q @ K^T"

    if bf16_exp is None:
        bf16_exp = _supports_bf16_eup()

    # Weights as bf16 once (MXU native operands; accumulation stays f32).
    wq_b = W_q.astype(jnp.bfloat16)
    wk_b = W_k.astype(jnp.bfloat16)
    wv_b = W_v.astype(jnp.bfloat16)

    # ---- Stage 1: Q / K / V projections (row-tiled, lane-dense bf16) --------
    scale = 1.0 / float(d_k) ** 0.5
    qp = _project(q, wq_b, scale=scale)   # pre-scaled Q
    kp = _project(k, wk_b)
    vp = _project(v, wv_b)

    # ---- Stage 2: flash attention -------------------------------------------
    block_q = _choose_block(n, block_q)
    # v7x megacore: make sure the "parallel" q axis has >= 2 blocks if possible.
    if n // block_q < 2 and block_q >= 256 and block_q % 2 == 0 and n % (block_q // 2) == 0:
        block_q //= 2
    block_kv = _choose_block(N, block_kv)
    # TODO(synk): ragged n / N (non-multiples of the block size) would need
    # padding + masking of the tail blocks; test shapes are chosen aligned.
    assert n % block_q == 0 and N % block_kv == 0

    if mask:
        # Clamp dead (fully-masked) kv steps to the last live block so Pallas
        # elides their HBM->VMEM DMA; compute is skipped with pl.when.
        def kv_map(i, j):
            last_live = (i * block_q + (block_q - 1)) // block_kv
            return (jnp.minimum(j, last_live), 0)
    else:
        def kv_map(i, j):
            return (j, 0)

    kernel = functools.partial(_flash_attn_kernel,
                               block_q=block_q, block_kv=block_kv,
                               causal=mask, bf16_exp=bf16_exp)
    out = pl.pallas_call(
        kernel,
        out_shape=jax.ShapeDtypeStruct((n, dv), jnp.float32),
        grid_spec=pltpu.PrefetchScalarGridSpec(
            num_scalar_prefetch=0,
            grid=(n // block_q, N // block_kv),
            in_specs=[
                pl.BlockSpec((block_q, dk_out), lambda i, j: (i, 0)),  # Qp (scaled)
                pl.BlockSpec((block_kv, dk_out), kv_map),              # Kp
                pl.BlockSpec((block_kv, dv), kv_map),                  # Vp
            ],
            out_specs=pl.BlockSpec((block_q, dv), lambda i, j: (i, 0)),
            scratch_shapes=[
                pltpu.VMEM((block_q, 1), jnp.float32),   # running max
                pltpu.VMEM((block_q, 1), jnp.float32),   # running denom
                pltpu.VMEM((block_q, dv), jnp.float32),  # accumulator
            ]),
        compiler_params=pltpu.CompilerParams(
            dimension_semantics=("parallel", "arbitrary")),
    )(qp, kp, vp)
    return out


# ----------------------------- reference -------------------------------------

def reference_attention(q, k, v, W_q, W_k, W_v, d_k, mask):
    scores = (q @ W_q) @ (k @ W_k).T
    if mask:
        n, N = scores.shape
        tri = jnp.triu(jnp.ones((n, N), bool), 1)
        scores = jnp.where(tri, -jnp.inf, scores)
    attn = jax.nn.softmax(scores / jnp.sqrt(jnp.float32(d_k)), axis=1)
    return attn @ (v @ W_v)


# --------------------------------- main --------------------------------------

if __name__ == "__main__":
    # Small, lane-aligned stand-ins for the default 512/512/512 module sizes,
    # sized so stage 2 has multiple q blocks and multiple kv blocks.
    dim, d_k, d_v = 128, 128, 128
    n, N = 512, 1024                   # query length n, key/value length N

    key = jax.random.PRNGKey(0)
    kq, kk, kv_, kwq, kwk, kwv = jax.random.split(key, 6)
    q = jax.random.normal(kq, (n, dim), jnp.float32)
    k = jax.random.normal(kk, (N, dim), jnp.float32)
    v = jax.random.normal(kv_, (N, dim), jnp.float32)
    # Same init distribution as the PyTorch module: U(0,1)/sqrt(d).
    W_q = jax.random.uniform(kwq, (dim, d_k), jnp.float32) / jnp.sqrt(jnp.float32(d_k))
    W_k = jax.random.uniform(kwk, (dim, d_v), jnp.float32) / jnp.sqrt(jnp.float32(d_v))
    W_v = jax.random.uniform(kwv, (dim, d_v), jnp.float32) / jnp.sqrt(jnp.float32(d_v))

    for use_mask in (False, True):
        out = attention_layer(q, k, v, W_q, W_k, W_v, d_k=d_k, mask=use_mask)
        out = jax.block_until_ready(out)
        ref = jax.block_until_ready(
            reference_attention(q, k, v, W_q, W_k, W_v, d_k, use_mask))
        assert out.shape == (n, d_v)
        assert bool(jnp.all(jnp.isfinite(out)))
        max_err = float(jnp.max(jnp.abs(out - ref)))
        assert bool(jnp.allclose(out, ref, atol=2e-2, rtol=2e-2)), (use_mask, max_err)

    print("KERNEL_OK")
</pallas_src>

<mosaic_0001>
module attributes {stable_mosaic.version = 11 : i64} {
  func.func @_project_kernel(%arg0: i32, %arg1: memref<256x128xf32, #tpu.memory_space<vmem>>, %arg2: memref<128x128xbf16, #tpu.memory_space<vmem>>, %arg3: memref<256x128xbf16, #tpu.memory_space<vmem>>) attributes {dimension_semantics = [#tpu.dimension_semantics<parallel>], iteration_bounds = array<i64: 2>, scalar_prefetch = 0 : i64, scratch_operands = 0 : i64, tpu.core_type = #tpu.core_type<tc>, window_params = [{transform_indices = @transform_0, window_bounds = array<i64: 256, 128>}, {pipeline_mode = #tpu.pipeline_mode<synchronous>, transform_indices = @transform_1, window_bounds = array<i64: 128, 128>}, {transform_indices = @transform_2, window_bounds = array<i64: 256, 128>}]} {
    %c0 = arith.constant 0 : index
    %c0_0 = arith.constant 0 : index
    %0 = vector.load %arg1[%c0, %c0_0] : memref<256x128xf32, #tpu.memory_space<vmem>>, vector<256x128xf32>
    %1 = arith.truncf %0 : vector<256x128xf32> to vector<256x128xbf16>
    %c0_1 = arith.constant 0 : index
    %c0_2 = arith.constant 0 : index
    %2 = vector.load %arg2[%c0_1, %c0_2] : memref<128x128xbf16, #tpu.memory_space<vmem>>, vector<128x128xbf16>
    %cst = arith.constant dense<0.000000e+00> : vector<256x128xf32>
    %3 = tpu.matmul %1, %2, %cst {dimension_numbers = #tpu.dot_dimension_numbers<[1], [0], [0], [1], [0, 0, 1, 1], [], []>} : vector<256x128xbf16>, vector<128x128xbf16>, vector<256x128xf32> -> vector<256x128xf32>
    %cst_3 = arith.constant 0.0883883461 : f32
    %4 = vector.broadcast %cst_3 : f32 to vector<256x128xf32>
    %5 = arith.mulf %3, %4 : vector<256x128xf32>
    %6 = arith.truncf %5 : vector<256x128xf32> to vector<256x128xbf16>
    %c0_4 = arith.constant 0 : index
    %c0_5 = arith.constant 0 : index
    %7 = vector.load %arg3[%c0_4, %c0_5] : memref<256x128xbf16, #tpu.memory_space<vmem>>, vector<256x128xbf16>
    tpu.vector_store %arg3[%c0_4, %c0_5], %6 {strides = array<i32>} : memref<256x128xbf16, #tpu.memory_space<vmem>>, vector<256x128xbf16>,
    return
  }
  func.func @transform_0(%arg0: i32) -> (i32, i32) {
    %c0_i32 = arith.constant 0 : i32
    %c0_i32_0 = arith.constant 0 : i32
    return %arg0, %c0_i32 : i32, i32
  }
  func.func @transform_1(%arg0: i32) -> (i32, i32) {
    %c0_i32 = arith.constant 0 : i32
    %c0_i32_0 = arith.constant 0 : i32
    %c0_i32_1 = arith.constant 0 : i32
    return %c0_i32, %c0_i32_0 : i32, i32
  }
  func.func @transform_2(%arg0: i32) -> (i32, i32) {
    %c0_i32 = arith.constant 0 : i32
    %c0_i32_0 = arith.constant 0 : i32
    return %arg0, %c0_i32 : i32, i32
  }
}

</mosaic_0001>

<llo_original>
// kernel: tpu_custom_call.1
$region0: #{tpu_custom_call.1}
  #allocation0 [shape = 'u32[]', space=smem, size = 0x4, offset = 0x4, fixed_abs, tag = 'smem constant byte address 0x4 - core index']
  #allocation1 [shape = 'u32[144,128]{1,0:T(1,128)}', space=vmem, size = 0x12000, scoped, tag = 'internal scratch']
  %s0 = inlined_call_operand.hbm [shape: f32[512,128], index: 0, kind: input, shape index: {}]
  %s1 = inlined_call_operand.hbm [shape: bf16[128,128], index: 1, kind: input, shape index: {}]
  %s2 = inlined_call_operand.hbm [shape: bf16[512,128], index: 2, kind: output, shape index: {}]
  %s3 = sld [smem:[#allocation0]]
  $region49: #{tpu_custom_call.1} parent=0
    _
  %s5 = ssub.s32 1, %s3
  %s6 = scalar_select 0, %s5, %s3
  $region1: #{tpu_custom_call.1} parent=0
    #allocation2 [shape = 'u8[262144]{0}', space=vmem, size = 0x40000, scoped, tag = 'input window, operand 0']
    #allocation3 [shape = 's32[2]{0}', space=sflag, size = 0x8, scoped, tag = 'scoped memory for tpu_custom_call.1']
    #allocation4 [shape = 's32[2]{0}', space=sflag, size = 0x8, scoped, tag = 'scoped memory for tpu_custom_call.1']
    #allocation5 [shape = 'u8[32768]{0}', space=vmem, size = 0x8000, scoped, tag = 'input window, operand 1, single buffered']
    #allocation6 [shape = 's32[1]{0}', space=sflag, size = 0x4, scoped, tag = 'scoped memory for tpu_custom_call.1']
    #allocation7 [shape = 'u8[131072]{0}', space=vmem, size = 0x20000, scoped, tag = 'output window, operand 0']
    %7 = vsyncpa [#allocation3], 0
    %s8 = scalar_lea.sflag [#allocation3], 1
    %9 = vsyncpa %s8, 0
    %10 = vsyncpa [#allocation6], 0
    %11 = vsyncpa [#allocation4], 0
    %s12 = scalar_lea.sflag [#allocation4], 1
    %13 = vsyncpa %s12, 0
    loop: start=0, step=1, limit=4
    $region2: #{tpu_custom_call.1} parent=1 // loop_pre_header
      _
    $region3: #{tpu_custom_call.1} parent=1 // loop_header
      %s15 = sphi 0, %s19
      %p16 = scmp.ge.s32.totalorder %s15, 4
      %s25 = sphi 0, %s27
      %s28 = sphi 0, %s25
      %s29 = sphi 0, %s28
      %s45 = sphi 0, %s29
      %s49 = sphi 0, %s49
      %s51 = sphi 0, %s49
      %s52 = sphi 0, %s51
      %s66 = sphi 0, %s52
      %s72 = sphi 0, %s74
      %s75 = sphi 0, %s72
      %s76 = sphi 0, %s75
      %s92 = sphi 0, %s76
    $region4: #{tpu_custom_call.1} parent=1 // loop_header_branch
      %18 = sbr.rel (%p16) target = $region8
    $region5: #{tpu_custom_call.1} parent=1 // loop_body
      %s20 = ssub.s32 %s15, 1
      %s21 = ssub.s32 %s15, 2
      %s22 = sadd.s32 %s15, 1
      %s23 = ssub.s32 %s15, %s22
      %p24 = scmp.eq.s32.totalorder %s23, 0
      %s26 = sadd.s32 %s25, 1
      %s27 = scalar_select %p24, %s25, %s26
      %p30 = pneg %p24
      %p31 = scmp.eq.s32.totalorder %s15, 1
      %p32 = por %p30, %p31
      %p33 = scmp.ne.s32.totalorder %s25, %s28
      %p34 = scmp.eq.s32.totalorder %s15, 0
      %p35 = por %p33, %p34
      %p36 = scmp.ne.s32.totalorder %s25, %s28
      %p37 = scmp.eq.s32.totalorder %s20, 1
      %p38 = por %p36, %p37
      %p39 = scmp.ne.s32.totalorder %s28, %s29
      %p40 = scmp.eq.s32.totalorder %s20, 0
      %p41 = por %p39, %p40
      %p42 = scmp.ne.s32.totalorder %s28, %s29
      %p43 = scmp.eq.s32.totalorder %s21, 1
      %p44 = por %p42, %p43
      %p46 = scmp.ne.s32.totalorder %s29, %s45
      %p47 = scmp.eq.s32.totalorder %s21, 0
      %p48 = por %p46, %p47
      %s50 = sadd.s32 %s49, 1
      %p53 = scmp.eq.s32.totalorder %s15, 1
      %p54 = scmp.ne.s32.totalorder %s49, %s51
      %p55 = scmp.eq.s32.totalorder %s15, 0
      %p56 = por %p54, %p55
      %p57 = scmp.ne.s32.totalorder %s49, %s51
      %p58 = scmp.eq.s32.totalorder %s20, 1
      %p59 = por %p57, %p58
      %p60 = scmp.ne.s32.totalorder %s51, %s52
      %p61 = scmp.eq.s32.totalorder %s20, 0
      %p62 = por %p60, %p61
      %p63 = scmp.ne.s32.totalorder %s51, %s52
      %p64 = scmp.eq.s32.totalorder %s21, 1
      %p65 = por %p63, %p64
      %p67 = scmp.ne.s32.totalorder %s52, %s66
      %p68 = scmp.eq.s32.totalorder %s21, 0
      %p69 = por %p67, %p68
      %s70 = ssub.s32 %s15, %s22
      %p71 = scmp.eq.s32.totalorder %s70, 0
      %s73 = sadd.s32 %s72, 1
      %s74 = scalar_select %p71, %s72, %s73
      %p77 = pneg %p71
      %p78 = scmp.eq.s32.totalorder %s15, 1
      %p79 = por %p77, %p78
      %p80 = scmp.ne.s32.totalorder %s72, %s75
      %p81 = scmp.eq.s32.totalorder %s15, 0
      %p82 = por %p80, %p81
      %p83 = scmp.ne.s32.totalorder %s72, %s75
      %p84 = scmp.eq.s32.totalorder %s20, 1
      %p85 = por %p83, %p84
      %p86 = scmp.ne.s32.totalorder %s75, %s76
      %p87 = scmp.eq.s32.totalorder %s20, 0
      %p88 = por %p86, %p87
      %p89 = scmp.ne.s32.totalorder %s75, %s76
      %p90 = scmp.eq.s32.totalorder %s21, 1
      %p91 = por %p89, %p90
      %p93 = scmp.ne.s32.totalorder %s76, %s92
      %p94 = scmp.eq.s32.totalorder %s21, 0
      %p95 = por %p93, %p94
      %p96 = scmp.le.s32.totalorder 1, %s15
      %p97 = scmp.lt.s32.totalorder %s15, 3
      %p98 = pnand %p96, %p97
      %p99 = pneg %p98
      // Predicated region
      $region9: #{tpu_custom_call.1} parent=5 // pred_check
        _
      $region10: #{tpu_custom_call.1} parent=5 // pred_check_branch
        %101 = sbr.rel (%p98) target = $region12
      $region11: #{tpu_custom_call.1} parent=5 // pred_region
        %s102 = ssub.s32 %s15, 1
        // Predicated region
        $region13: #{tpu_custom_call.1} parent=11 // pred_check
          %p103 = pneg %p62
        $region14: #{tpu_custom_call.1} parent=11 // pred_check_branch
          %105 = sbr.rel (%p103) target = $region16
        $region15: #{tpu_custom_call.1} parent=11 // pred_region
          %s107 = ssub.s32 1024, 1024
          %108 = vsyncadd [#allocation6], %s107
          %s109 = sshll.u32 [#allocation5], 4
          %s110 = int_to_ptr.vmem [resolvable:$true] %s109
          %115 = dma.hbm_to_vmem [thread:$0]  %s1, 1024, %s110, [#allocation6], 64, 64, 4
        $region16: #{tpu_custom_call.1} parent=11 // pred_fallthru
          _
      $region12: #{tpu_custom_call.1} parent=5 // pred_fallthru
        _
      %p116 = scmp.lt.s32.totalorder %s15, 2
      // Predicated region
      $region17: #{tpu_custom_call.1} parent=5 // pred_check
        %p117 = pneg %p116
      $region18: #{tpu_custom_call.1} parent=5 // pred_check_branch
        %119 = sbr.rel (%p117) target = $region20
      $region19: #{tpu_custom_call.1} parent=5 // pred_region
        // Predicated region
        $region21: #{tpu_custom_call.1} parent=19 // pred_check
          %p120 = pneg %p35
        $region22: #{tpu_custom_call.1} parent=19 // pred_check_branch
          %122 = sbr.rel (%p120) target = $region24
        $region23: #{tpu_custom_call.1} parent=19 // pred_region
          %s123 = sand.u32 %s25, 1
          %s124 = scalar_lea.sflag [#allocation3], %s123
          %s125 = sand.u32 %s25, 1
          %s126 = smul.addr %s125, 256
          %s127 = scalar_lea.vmem [#allocation2], %s126
          %s128 = smul.u32 32, %s15
          %s130 = ssub.s32 4096, 4096
          %131 = vsyncadd %s124, %s130
          %s132 = smul.addr %s128, 128
          %s133 = scalar_lea.hbm %s0, %s132
          %s134 = sshll.u32 %s127, 4
          %s135 = int_to_ptr.vmem [resolvable:$true] %s134
          %140 = dma.hbm_to_vmem [thread:$0]  %s133, 4096, %s135, %s124, 128, 128, 8
        $region24: #{tpu_custom_call.1} parent=19 // pred_fallthru
          _
      $region20: #{tpu_custom_call.1} parent=5 // pred_fallthru
        _
      %p141 = scmp.le.s32.totalorder 1, %s15
      %p142 = scmp.lt.s32.totalorder %s15, 3
      %p143 = pnand %p141, %p142
      %p144 = pneg %p143
      // Predicated region
      $region25: #{tpu_custom_call.1} parent=5 // pred_check
        _
      $region26: #{tpu_custom_call.1} parent=5 // pred_check_branch
        %146 = sbr.rel (%p143) target = $region28
      $region27: #{tpu_custom_call.1} parent=5 // pred_region
        %s147 = ssub.s32 %s15, 1
        %s148 = sand.u32 %s28, 1
        %s149 = scalar_lea.sflag [#allocation3], %s148
        %s150 = sand.u32 %s28, 1
        %s151 = smul.addr %s150, 256
        %s152 = scalar_lea.vmem [#allocation2], %s151
        // Predicated region
        $region29: #{tpu_custom_call.1} parent=27 // pred_check
          %p153 = pneg %p41
        $region30: #{tpu_custom_call.1} parent=27 // pred_check_branch
          %155 = sbr.rel (%p153) target = $region32
        $region31: #{tpu_custom_call.1} parent=27 // pred_region
          %156 = dma.done %s149, 4096
        $region32: #{tpu_custom_call.1} parent=27 // pred_fallthru
          _
        // Predicated region
        $region33: #{tpu_custom_call.1} parent=27 // pred_check
          %p157 = pneg %p62
        $region34: #{tpu_custom_call.1} parent=27 // pred_check_branch
          %159 = sbr.rel (%p157) target = $region36
        $region35: #{tpu_custom_call.1} parent=27 // pred_region
          %160 = dma.done [#allocation6], 1024
        $region36: #{tpu_custom_call.1} parent=27 // pred_fallthru
          _
        %s161 = sand.u32 %s28, 1
        %s162 = scalar_lea.sflag [#allocation3], %s161
        %s163 = sand.u32 %s28, 1
        %s164 = smul.addr %s163, 256
        %s165 = scalar_lea.vmem [#allocation2], %s164
        %p166 = pneg %p41
        %p167 = pneg %p38
        %p168 = pneg %p62
        %p169 = pneg %p59
        %p170 = pneg %p88
        %p171 = pneg %p85
        %s172 = sand.u32 %s75, 1
        %s173 = scalar_lea.sflag [#allocation4], %s172
        %s174 = sand.u32 %s75, 1
        %s175 = smul.addr %s174, 128
        %s176 = scalar_lea.vmem [#allocation7], %s175
        %s177 = smul.u32 32, %s20
        %s178 = smul.u32 32, %s20
        %v180 = vld [vmem:[%s152] sm:$0xff]
        %v181 = vld [vmem:[%s152 + $0x8] sm:$0xff]
        %v182 = vld [vmem:[%s152 + $0x10] sm:$0xff]
        %v183 = vld [vmem:[%s152 + $0x18] sm:$0xff]
        %v184 = vld [vmem:[%s152 + $0x20] sm:$0xff]
        %v185 = vld [vmem:[%s152 + $0x28] sm:$0xff]
        %v186 = vld [vmem:[%s152 + $0x30] sm:$0xff]
        %v187 = vld [vmem:[%s152 + $0x38] sm:$0xff]
        %v188 = vld [vmem:[%s152 + $0x40] sm:$0xff]
        %v189 = vld [vmem:[%s152 + $0x48] sm:$0xff]
        %v190 = vld [vmem:[%s152 + $0x50] sm:$0xff]
        %v191 = vld [vmem:[%s152 + $0x58] sm:$0xff]
        %v192 = vld [vmem:[%s152 + $0x60] sm:$0xff]
        %v193 = vld [vmem:[%s152 + $0x68] sm:$0xff]
        %v194 = vld [vmem:[%s152 + $0x70] sm:$0xff]
        %v195 = vld [vmem:[%s152 + $0x78] sm:$0xff]
        %v196 = vld [vmem:[%s152 + $0x80] sm:$0xff]
        %v197 = vld [vmem:[%s152 + $0x88] sm:$0xff]
        %v198 = vld [vmem:[%s152 + $0x90] sm:$0xff]
        %v199 = vld [vmem:[%s152 + $0x98] sm:$0xff]
        %v200 = vld [vmem:[%s152 + $0xa0] sm:$0xff]
        %v201 = vld [vmem:[%s152 + $0xa8] sm:$0xff]
        %v202 = vld [vmem:[%s152 + $0xb0] sm:$0xff]
        %v203 = vld [vmem:[%s152 + $0xb8] sm:$0xff]
        %v204 = vld [vmem:[%s152 + $0xc0] sm:$0xff]
        %v205 = vld [vmem:[%s152 + $0xc8] sm:$0xff]
        %v206 = vld [vmem:[%s152 + $0xd0] sm:$0xff]
        %v207 = vld [vmem:[%s152 + $0xd8] sm:$0xff]
        %v208 = vld [vmem:[%s152 + $0xe0] sm:$0xff]
        %v209 = vld [vmem:[%s152 + $0xe8] sm:$0xff]
        %v210 = vld [vmem:[%s152 + $0xf0] sm:$0xff]
        %v211 = vld [vmem:[%s152 + $0xf8] sm:$0xff]
        %v212 = vpack.c.bf16 %v181, %v180
        %v213 = vpack.c.bf16 %v183, %v182
        %v214 = vpack.c.bf16 %v185, %v184
        %v215 = vpack.c.bf16 %v187, %v186
        %v216 = vpack.c.bf16 %v189, %v188
        %v217 = vpack.c.bf16 %v191, %v190
        %v218 = vpack.c.bf16 %v193, %v192
        %v219 = vpack.c.bf16 %v195, %v194
        %v220 = vpack.c.bf16 %v197, %v196
        %v221 = vpack.c.bf16 %v199, %v198
        %v222 = vpack.c.bf16 %v201, %v200
        %v223 = vpack.c.bf16 %v203, %v202
        %v224 = vpack.c.bf16 %v205, %v204
        %v225 = vpack.c.bf16 %v207, %v206
        %v226 = vpack.c.bf16 %v209, %v208
        %v227 = vpack.c.bf16 %v211, %v210
        %v228 = vld [vmem:[#allocation5] sm:$0xf]
        %v229 = vld [vmem:[#allocation5 + $0x4] sm:$0xf]
        %v230 = vld [vmem:[#allocation5 + $0x8] sm:$0xf]
        %v231 = vld [vmem:[#allocation5 + $0xc] sm:$0xf]
        %v232 = vld [vmem:[#allocation5 + $0x10] sm:$0xf]
        %v233 = vld [vmem:[#allocation5 + $0x14] sm:$0xf]
        %v234 = vld [vmem:[#allocation5 + $0x18] sm:$0xf]
        %v235 = vld [vmem:[#allocation5 + $0x1c] sm:$0xf]
        %v236 = vld [vmem:[#allocation5 + $0x20] sm:$0xf]
        %v237 = vld [vmem:[#allocation5 + $0x24] sm:$0xf]
        %v238 = vld [vmem:[#allocation5 + $0x28] sm:$0xf]
        %v239 = vld [vmem:[#allocation5 + $0x2c] sm:$0xf]
        %v240 = vld [vmem:[#allocation5 + $0x30] sm:$0xf]
        %v241 = vld [vmem:[#allocation5 + $0x34] sm:$0xf]
        %v242 = vld [vmem:[#allocation5 + $0x38] sm:$0xf]
        %v243 = vld [vmem:[#allocation5 + $0x3c] sm:$0xf]
        %v260 = vunpack.c.l.b16 %v228
        %v261 = vunpack.c.l.b16 %v229
        %v262 = vunpack.c.l.b16 %v230
        %v263 = vunpack.c.l.b16 %v231
        %v264 = vunpack.c.l.b16 %v232
        %v265 = vunpack.c.l.b16 %v233
        %v266 = vunpack.c.l.b16 %v234
        %v267 = vunpack.c.l.b16 %v235
        %v268 = vunpack.c.l.b16 %v236
        %v269 = vunpack.c.l.b16 %v237
        %v270 = vunpack.c.l.b16 %v238
        %v271 = vunpack.c.l.b16 %v239
        %v272 = vunpack.c.l.b16 %v240
        %v273 = vunpack.c.l.b16 %v241
        %v274 = vunpack.c.l.b16 %v242
        %v275 = vunpack.c.l.b16 %v243
        %v276 = vpack.c.b16 %v261, %v260
        %v277 = vpack.c.b16 %v263, %v262
        %v278 = vpack.c.b16 %v265, %v264
        %v279 = vpack.c.b16 %v267, %v266
        %v280 = vpack.c.b16 %v269, %v268
        %v281 = vpack.c.b16 %v271, %v270
        %v282 = vpack.c.b16 %v273, %v272
        %v283 = vpack.c.b16 %v275, %v274
        %292 = vmatprep.subr.bf16.mxu0 0
        %293 = vmatpush1.bf16.msra.mxu0 %v276
        %294 = vmatprep.subr.bf16.mxu0 0
        %295 = vmatpush1.bf16.msra.mxu0 %v277
        %296 = vmatprep.subr.bf16.mxu0 0
        %297 = vmatpush1.bf16.msra.mxu0 %v278
        %298 = vmatprep.subr.bf16.mxu0 0
        %299 = vmatpush1.bf16.msra.mxu0 %v279
        %300 = vmatprep.subr.bf16.mxu0 0
        %301 = vmatpush1.bf16.msra.mxu0 %v280
        %302 = vmatprep.subr.bf16.mxu0 0
        %303 = vmatpush1.bf16.msra.mxu0 %v281
        %304 = vmatprep.subr.bf16.mxu0 0
        %305 = vmatpush1.bf16.msra.mxu0 %v282
        %306 = vmatprep.subr.bf16.mxu0 0
        %307 = vmatpush1.bf16.msra.mxu0 %v283
        %308 = vmatprep.subr.bf16.mxu0 0
        %309 = vmatpush1.bf16.msra.mxu0 0
        %310 = vmatprep.subr.bf16.mxu0 0
        %311 = vmatpush1.bf16.msra.mxu0 0
        %312 = vmatprep.subr.bf16.mxu0 0
        %313 = vmatpush1.bf16.msra.mxu0 0
        %314 = vmatprep.subr.bf16.mxu0 0
        %315 = vmatpush1.bf16.msra.mxu0 0
        %316 = vmatprep.subr.bf16.mxu0 0
        %317 = vmatpush1.bf16.msra.mxu0 0
        %318 = vmatprep.subr.bf16.mxu0 0
        %319 = vmatpush1.bf16.msra.mxu0 0
        %320 = vmatprep.subr.bf16.mxu0 0
        %321 = vmatpush1.bf16.msra.mxu0 0
        %322 = vmatprep.subr.bf16.mxu0 0
        %323 = vmatpush1.bf16.msra.mxu0 0
        %324 = vmatprep.mubr.bf16.mxu0 0
        %325 = vmatmul.mubr.bf16.gmra.mrb[0].mxu0 %v212
        %v326 = vpop.f32.mrb[0].mxu0
        %v327 = vadd.f32 0.0, %v326
        %v328 = vpop.f32.mrb[0].mxu0
        %v329 = vpop.f32.mrb[0].mxu0
        %v330 = vadd.f32 0.0, %v329
        %v331 = vpop.f32.mrb[0].mxu0
        %332 = vmatprep.mubr.bf16.mxu0 0
        %333 = vmatmul.mubr.bf16.gmra.mrb[0].mxu0 %v213
        %v334 = vpop.f32.mrb[0].mxu0
        %v335 = vadd.f32 0.0, %v334
        %v336 = vpop.f32.mrb[0].mxu0
        %v337 = vpop.f32.mrb[0].mxu0
        %v338 = vadd.f32 0.0, %v337
        %v339 = vpop.f32.mrb[0].mxu0
        %340 = vmatprep.mubr.bf16.mxu0 0
        %341 = vmatmul.mubr.bf16.gmra.mrb[0].mxu0 %v214
        %v342 = vpop.f32.mrb[0].mxu0
        %v343 = vadd.f32 0.0, %v342
        %v344 = vpop.f32.mrb[0].mxu0
        %v345 = vpop.f32.mrb[0].mxu0
        %v346 = vadd.f32 0.0, %v345
        %v347 = vpop.f32.mrb[0].mxu0
        %348 = vmatprep.mubr.bf16.mxu0 0
        %349 = vmatmul.mubr.bf16.gmra.mrb[0].mxu0 %v215
        %v350 = vpop.f32.mrb[0].mxu0
        %v351 = vadd.f32 0.0, %v350
        %v352 = vpop.f32.mrb[0].mxu0
        %v353 = vpop.f32.mrb[0].mxu0
        %v354 = vadd.f32 0.0, %v353
        %v355 = vpop.f32.mrb[0].mxu0
        %356 = vmatprep.mubr.bf16.mxu0 0
        %357 = vmatmul.mubr.bf16.gmra.mrb[0].mxu0 %v216
        %v358 = vpop.f32.mrb[0].mxu0
        %v359 = vadd.f32 0.0, %v358
        %v360 = vpop.f32.mrb[0].mxu0
        %v361 = vpop.f32.mrb[0].mxu0
        %v362 = vadd.f32 0.0, %v361
        %v363 = vpop.f32.mrb[0].mxu0
        %364 = vmatprep.mubr.bf16.mxu0 0
        %365 = vmatmul.mubr.bf16.gmra.mrb[0].mxu0 %v217
        %v366 = vpop.f32.mrb[0].mxu0
        %v367 = vadd.f32 0.0, %v366
        %v368 = vpop.f32.mrb[0].mxu0
        %v369 = vpop.f32.mrb[0].mxu0
        %v370 = vadd.f32 0.0, %v369
        %v371 = vpop.f32.mrb[0].mxu0
        %372 = vmatprep.mubr.bf16.mxu0 0
        %373 = vmatmul.mubr.bf16.gmra.mrb[0].mxu0 %v218
        %v374 = vpop.f32.mrb[0].mxu0
        %v375 = vadd.f32 0.0, %v374
        %v376 = vpop.f32.mrb[0].mxu0
        %v377 = vpop.f32.mrb[0].mxu0
        %v378 = vadd.f32 0.0, %v377
        %v379 = vpop.f32.mrb[0].mxu0
        %380 = vmatprep.mubr.bf16.mxu0 0
        %381 = vmatmul.mubr.bf16.gmra.mrb[0].mxu0 %v219
        %v382 = vpop.f32.mrb[0].mxu0
        %v383 = vadd.f32 0.0, %v382
        %v384 = vpop.f32.mrb[0].mxu0
        %v385 = vpop.f32.mrb[0].mxu0
        %v386 = vadd.f32 0.0, %v385
        %v387 = vpop.f32.mrb[0].mxu0
        %388 = vmatprep.mubr.bf16.mxu0 0
        %389 = vmatmul.mubr.bf16.gmra.mrb[0].mxu0 %v220
        %v390 = vpop.f32.mrb[0].mxu0
        %v391 = vadd.f32 0.0, %v390
        %v392 = vpop.f32.mrb[0].mxu0
        %v393 = vpop.f32.mrb[0].mxu0
        %v394 = vadd.f32 0.0, %v393
        %v395 = vpop.f32.mrb[0].mxu0
        %396 = vmatprep.mubr.bf16.mxu0 0
        %397 = vmatmul.mubr.bf16.gmra.mrb[0].mxu0 %v221
        %v398 = vpop.f32.mrb[0].mxu0
        %v399 = vadd.f32 0.0, %v398
        %v400 = vpop.f32.mrb[0].mxu0
        %v401 = vpop.f32.mrb[0].mxu0
        %v402 = vadd.f32 0.0, %v401
        %v403 = vpop.f32.mrb[0].mxu0
        %404 = vmatprep.mubr.bf16.mxu0 0
        %405 = vmatmul.mubr.bf16.gmra.mrb[0].mxu0 %v222
        %v406 = vpop.f32.mrb[0].mxu0
        %v407 = vadd.f32 0.0, %v406
        %v408 = vpop.f32.mrb[0].mxu0
        %v409 = vpop.f32.mrb[0].mxu0
        %v410 = vadd.f32 0.0, %v409
        %v411 = vpop.f32.mrb[0].mxu0
        %412 = vmatprep.mubr.bf16.mxu0 0
        %413 = vmatmul.mubr.bf16.gmra.mrb[0].mxu0 %v223
        %v414 = vpop.f32.mrb[0].mxu0
        %v415 = vadd.f32 0.0, %v414
        %v416 = vpop.f32.mrb[0].mxu0
        %v417 = vpop.f32.mrb[0].mxu0
        %v418 = vadd.f32 0.0, %v417
        %v419 = vpop.f32.mrb[0].mxu0
        %420 = vmatprep.mubr.bf16.mxu0 0
        %421 = vmatmul.mubr.bf16.gmra.mrb[0].mxu0 %v224
        %v422 = vpop.f32.mrb[0].mxu0
        %v423 = vadd.f32 0.0, %v422
        %v424 = vpop.f32.mrb[0].mxu0
        %v425 = vpop.f32.mrb[0].mxu0
        %v426 = vadd.f32 0.0, %v425
        %v427 = vpop.f32.mrb[0].mxu0
        %428 = vmatprep.mubr.bf16.mxu0 0
        %429 = vmatmul.mubr.bf16.gmra.mrb[0].mxu0 %v225
        %v430 = vpop.f32.mrb[0].mxu0
        %v431 = vadd.f32 0.0, %v430
        %v432 = vpop.f32.mrb[0].mxu0
        %v433 = vpop.f32.mrb[0].mxu0
        %v434 = vadd.f32 0.0, %v433
        %v435 = vpop.f32.mrb[0].mxu0
        %436 = vmatprep.mubr.bf16.mxu0 0
        %437 = vmatmul.mubr.bf16.gmra.mrb[0].mxu0 %v226
        %v438 = vpop.f32.mrb[0].mxu0
        %v439 = vadd.f32 0.0, %v438
        %v440 = vpop.f32.mrb[0].mxu0
        %v441 = vpop.f32.mrb[0].mxu0
        %v442 = vadd.f32 0.0, %v441
        %v443 = vpop.f32.mrb[0].mxu0
        %444 = vmatprep.mubr.bf16.mxu0 0
        %445 = vmatmul.mubr.bf16.gmra.mrb[0].mxu0 %v227
        %v446 = vpop.f32.mrb[0].mxu0
        %v447 = vadd.f32 0.0, %v446
        %v448 = vpop.f32.mrb[0].mxu0
        %v449 = vpop.f32.mrb[0].mxu0
        %v450 = vadd.f32 0.0, %v449
        %v451 = vpop.f32.mrb[0].mxu0
        %452 = vdwg.mxu0
        %v453 = vmul.f32 %v327, 0.088388346
        %v454 = vmul.f32 %v330, 0.088388346
        %v455 = vmul.f32 %v335, 0.088388346
        %v456 = vmul.f32 %v338, 0.088388346
        %v457 = vmul.f32 %v343, 0.088388346
        %v458 = vmul.f32 %v346, 0.088388346
        %v459 = vmul.f32 %v351, 0.088388346
        %v460 = vmul.f32 %v354, 0.088388346
        %v461 = vmul.f32 %v359, 0.088388346
        %v462 = vmul.f32 %v362, 0.088388346
        %v463 = vmul.f32 %v367, 0.088388346
        %v464 = vmul.f32 %v370, 0.088388346
        %v465 = vmul.f32 %v375, 0.088388346
        %v466 = vmul.f32 %v378, 0.088388346
        %v467 = vmul.f32 %v383, 0.088388346
        %v468 = vmul.f32 %v386, 0.088388346
        %v469 = vmul.f32 %v391, 0.088388346
        %v470 = vmul.f32 %v394, 0.088388346
        %v471 = vmul.f32 %v399, 0.088388346
        %v472 = vmul.f32 %v402, 0.088388346
        %v473 = vmul.f32 %v407, 0.088388346
        %v474 = vmul.f32 %v410, 0.088388346
        %v475 = vmul.f32 %v415, 0.088388346
        %v476 = vmul.f32 %v418, 0.088388346
        %v477 = vmul.f32 %v423, 0.088388346
        %v478 = vmul.f32 %v426, 0.088388346
        %v479 = vmul.f32 %v431, 0.088388346
        %v480 = vmul.f32 %v434, 0.088388346
        %v481 = vmul.f32 %v439, 0.088388346
        %v482 = vmul.f32 %v442, 0.088388346
        %v483 = vmul.f32 %v447, 0.088388346
        %v484 = vmul.f32 %v450, 0.088388346
        %v485 = vpack.c.bf16 %v454, %v453
        %v486 = vpack.c.bf16 %v456, %v455
        %v487 = vpack.c.bf16 %v458, %v457
        %v488 = vpack.c.bf16 %v460, %v459
        %v489 = vpack.c.bf16 %v462, %v461
        %v490 = vpack.c.bf16 %v464, %v463
        %v491 = vpack.c.bf16 %v466, %v465
        %v492 = vpack.c.bf16 %v468, %v467
        %v493 = vpack.c.bf16 %v470, %v469
        %v494 = vpack.c.bf16 %v472, %v471
        %v495 = vpack.c.bf16 %v474, %v473
        %v496 = vpack.c.bf16 %v476, %v475
        %v497 = vpack.c.bf16 %v478, %v477
        %v498 = vpack.c.bf16 %v480, %v479
        %v499 = vpack.c.bf16 %v482, %v481
        %v500 = vpack.c.bf16 %v484, %v483
        %v517 = vunpack.c.l.b16 %v485
        %v518 = vunpack.c.h.b16 %v485
        %v519 = vunpack.c.l.b16 %v486
        %v520 = vunpack.c.h.b16 %v486
        %v521 = vunpack.c.l.b16 %v487
        %v522 = vunpack.c.h.b16 %v487
        %v523 = vunpack.c.l.b16 %v488
        %v524 = vunpack.c.h.b16 %v488
        %v525 = vunpack.c.l.b16 %v489
        %v526 = vunpack.c.h.b16 %v489
        %v527 = vunpack.c.l.b16 %v490
        %v528 = vunpack.c.h.b16 %v490
        %v529 = vunpack.c.l.b16 %v491
        %v530 = vunpack.c.h.b16 %v491
        %v531 = vunpack.c.l.b16 %v492
        %v532 = vunpack.c.h.b16 %v492
        %v533 = vunpack.c.l.b16 %v493
        %v534 = vunpack.c.h.b16 %v493
        %v535 = vunpack.c.l.b16 %v494
        %v536 = vunpack.c.h.b16 %v494
        %v537 = vunpack.c.l.b16 %v495
        %v538 = vunpack.c.h.b16 %v495
        %v539 = vunpack.c.l.b16 %v496
        %v540 = vunpack.c.h.b16 %v496
        %v541 = vunpack.c.l.b16 %v497
        %v542 = vunpack.c.h.b16 %v497
        %v543 = vunpack.c.l.b16 %v498
        %v544 = vunpack.c.h.b16 %v498
        %v545 = vunpack.c.l.b16 %v499
        %v546 = vunpack.c.h.b16 %v499
        %v547 = vunpack.c.l.b16 %v500
        %v548 = vunpack.c.h.b16 %v500
        %v549 = vpack.c.b16 %v517, %v517
        %v550 = vpack.c.b16 %v518, %v518
        %v551 = vpack.c.b16 %v519, %v519
        %v552 = vpack.c.b16 %v520, %v520
        %v553 = vpack.c.b16 %v521, %v521
        %v554 = vpack.c.b16 %v522, %v522
        %v555 = vpack.c.b16 %v523, %v523
        %v556 = vpack.c.b16 %v524, %v524
        %v557 = vpack.c.b16 %v525, %v525
        %v558 = vpack.c.b16 %v526, %v526
        %v559 = vpack.c.b16 %v527, %v527
        %v560 = vpack.c.b16 %v528, %v528
        %v561 = vpack.c.b16 %v529, %v529
        %v562 = vpack.c.b16 %v530, %v530
        %v563 = vpack.c.b16 %v531, %v531
        %v564 = vpack.c.b16 %v532, %v532
        %v565 = vpack.c.b16 %v533, %v533
        %v566 = vpack.c.b16 %v534, %v534
        %v567 = vpack.c.b16 %v535, %v535
        %v568 = vpack.c.b16 %v536, %v536
        %v569 = vpack.c.b16 %v537, %v537
        %v570 = vpack.c.b16 %v538, %v538
        %v571 = vpack.c.b16 %v539, %v539
        %v572 = vpack.c.b16 %v540, %v540
        %v573 = vpack.c.b16 %v541, %v541
        %v574 = vpack.c.b16 %v542, %v542
        %v575 = vpack.c.b16 %v543, %v543
        %v576 = vpack.c.b16 %v544, %v544
        %v577 = vpack.c.b16 %v545, %v545
        %v578 = vpack.c.b16 %v546, %v546
        %v579 = vpack.c.b16 %v547, %v547
        %v580 = vpack.c.b16 %v548, %v548
        %613 = vst [vmem:[%s176] sm:$0xf] %v549
        %614 = vst [vmem:[%s176 + $0x4] sm:$0xf] %v550
        %615 = vst [vmem:[%s176 + $0x8] sm:$0xf] %v551
        %616 = vst [vmem:[%s176 + $0xc] sm:$0xf] %v552
        %617 = vst [vmem:[%s176 + $0x10] sm:$0xf] %v553
        %618 = vst [vmem:[%s176 + $0x14] sm:$0xf] %v554
        %619 = vst [vmem:[%s176 + $0x18] sm:$0xf] %v555
        %620 = vst [vmem:[%s176 + $0x1c] sm:$0xf] %v556
        %621 = vst [vmem:[%s176 + $0x20] sm:$0xf] %v557
        %622 = vst [vmem:[%s176 + $0x24] sm:$0xf] %v558
        %623 = vst [vmem:[%s176 + $0x28] sm:$0xf] %v559
        %624 = vst [vmem:[%s176 + $0x2c] sm:$0xf] %v560
        %625 = vst [vmem:[%s176 + $0x30] sm:$0xf] %v561
        %626 = vst [vmem:[%s176 + $0x34] sm:$0xf] %v562
        %627 = vst [vmem:[%s176 + $0x38] sm:$0xf] %v563
        %628 = vst [vmem:[%s176 + $0x3c] sm:$0xf] %v564
        %629 = vst [vmem:[%s176 + $0x40] sm:$0xf] %v565
        %630 = vst [vmem:[%s176 + $0x44] sm:$0xf] %v566
        %631 = vst [vmem:[%s176 + $0x48] sm:$0xf] %v567
        %632 = vst [vmem:[%s176 + $0x4c] sm:$0xf] %v568
        %633 = vst [vmem:[%s176 + $0x50] sm:$0xf] %v569
        %634 = vst [vmem:[%s176 + $0x54] sm:$0xf] %v570
        %635 = vst [vmem:[%s176 + $0x58] sm:$0xf] %v571
        %636 = vst [vmem:[%s176 + $0x5c] sm:$0xf] %v572
        %637 = vst [vmem:[%s176 + $0x60] sm:$0xf] %v573
        %638 = vst [vmem:[%s176 + $0x64] sm:$0xf] %v574
        %639 = vst [vmem:[%s176 + $0x68] sm:$0xf] %v575
        %640 = vst [vmem:[%s176 + $0x6c] sm:$0xf] %v576
        %641 = vst [vmem:[%s176 + $0x70] sm:$0xf] %v577
        %642 = vst [vmem:[%s176 + $0x74] sm:$0xf] %v578
        %643 = vst [vmem:[%s176 + $0x78] sm:$0xf] %v579
        %644 = vst [vmem:[%s176 + $0x7c] sm:$0xf] %v580
        %s645 = sand.u32 %s75, 1
        %s646 = scalar_lea.sflag [#allocation4], %s645
        %s647 = sand.u32 %s75, 1
        %s648 = smul.addr %s647, 128
        %s649 = scalar_lea.vmem [#allocation7], %s648
        // Predicated region
        $region37: #{tpu_custom_call.1} parent=27 // pred_check
          %p650 = pneg %p85
        $region38: #{tpu_custom_call.1} parent=27 // pred_check_branch
          %652 = sbr.rel (%p650) target = $region40
        $region39: #{tpu_custom_call.1} parent=27 // pred_region
          %s653 = smul.u32 32, %s20
          %s655 = ssub.s32 2048, 2048
          %656 = vsyncadd %s646, %s655
          %s657 = smul.addr %s653, 64
          %s658 = scalar_lea.hbm %s2, %s657
          %s659 = sshll.u32 %s649, 4
          %s660 = int_to_ptr.vmem [resolvable:$true] %s659
          %665 = dma.vmem_to_hbm [thread:$0]  %s660, 2048, %s658, %s646, 64, 64, 4
        $region40: #{tpu_custom_call.1} parent=27 // pred_fallthru
          _
      $region28: #{tpu_custom_call.1} parent=5 // pred_fallthru
        _
      %p666 = scmp.le.s32.totalorder 2, %s15
      // Predicated region
      $region41: #{tpu_custom_call.1} parent=5 // pred_check
        %p667 = pneg %p666
      $region42: #{tpu_custom_call.1} parent=5 // pred_check_branch
        %669 = sbr.rel (%p667) target = $region44
      $region43: #{tpu_custom_call.1} parent=5 // pred_region
        %s670 = ssub.s32 %s15, 2
        // Predicated region
        $region45: #{tpu_custom_call.1} parent=43 // pred_check
          %p671 = pneg %p91
        $region46: #{tpu_custom_call.1} parent=43 // pred_check_branch
          %673 = sbr.rel (%p671) target = $region48
        $region47: #{tpu_custom_call.1} parent=43 // pred_region
          %s674 = sand.u32 %s76, 1
          %s675 = scalar_lea.sflag [#allocation4], %s674
          %s676 = sand.u32 %s76, 1
          %s677 = smul.addr %s676, 128
          %s678 = scalar_lea.vmem [#allocation7], %s677
          %679 = dma.done %s675, 2048
        $region48: #{tpu_custom_call.1} parent=43 // pred_fallthru
          _
      $region44: #{tpu_custom_call.1} parent=5 // pred_fallthru
        _
    $region6: #{tpu_custom_call.1} parent=1 // loop_footer
      %s19 = sadd.s32 1, %s15
    $region7: #{tpu_custom_call.1} parent=1 // loop_footer_branch
      %14 = sbr.rel target = $region3
    $region8: #{tpu_custom_call.1} parent=1 // loop_exit
      _
    %680 = vsyncpa [#allocation3], 1
    %s681 = scalar_lea.sflag [#allocation3], 1
    %682 = vsyncpa %s681, 1
    %683 = vsyncpa [#allocation6], 1
    %684 = vsyncpa [#allocation4], 1
    %s685 = scalar_lea.sflag [#allocation4], 1
    %686 = vsyncpa %s685, 1

</llo_original>
